<compile_context>
chip_gen: v5e
topology: v5e:2x2
jax: 0.10.0
libtpu: 0.0.40
codegen_flags: <defaults>
</compile_context>

<pallas_src>
import functools

import jax
import jax.numpy as jnp
from jax import lax
from jax.experimental import pallas as pl
from jax.experimental.pallas import tpu as pltpu

TARGET_BLOCK_BYTES = 2 << 20     # ~2 MiB per input per grid step (v7x-safe)
MAX_VMEM_LIMIT = 48 << 20        # stay well under v7x's 64 MiB physical per-TC VMEM
MIN_VMEM_LIMIT = 32 << 20
GROUP = 8                        # rows processed per vreg-resident inner step
STATIC_GROUP_UNROLL = 4          # <= this many groups: python unroll, else fori_loop


# --------------------------------------------------------------------------
# Hardware / tiling helpers
# --------------------------------------------------------------------------
def _num_tensorcores():
    """TensorCores sharing HBM on one jax device (2 on v4/v5p/v7x, else 1)."""
    try:
        kind = jax.devices()[0].device_kind.lower()
    except Exception:  # pragma: no cover - defensive
        return 1
    if ("lite" in kind or "v5e" in kind or "v6" in kind
            or "v2" in kind or "v3" in kind):
        return 1
    if "v4" in kind or "v5p" in kind or "v5" in kind or "7" in kind:
        return 2
    return 1


def _pick_tile_rows(n_rows, row_bytes, itemsize):
    """Largest row tile <= ~TARGET_BLOCK_BYTES, multiple of 8 (16 for bf16)."""
    group = 16 if itemsize == 2 else 8
    t = (TARGET_BLOCK_BYTES // max(row_bytes, 1)) // group * group
    t = max(group, t)
    t = min(t, n_rows)
    return int(max(8, t - (t % 8)))


def _pick_acc_lanes(hw):
    """Accumulator lane extent: <= 512, multiple of 128, divides hw."""
    if hw <= 512:
        return hw
    for c in (512, 384, 256, 128):
        if hw % c == 0:
            return c
    return hw


# --------------------------------------------------------------------------
# Per-term loss definitions (operate on (8, acc_lanes) channel chunks)
# --------------------------------------------------------------------------
def _bce_term(get_x, get_t):
    """components.Bce: focal BCE-with-logits (alpha=0.5, gamma=1)."""
    xc = get_x(0)
    tc = get_t(0)
    mask = jnp.logical_not(jnp.isnan(tc))
    t01 = jnp.where(tc > 0.0, 1.0, 0.0)           # NaN > 0 is False
    e = jnp.exp(-jnp.abs(xc))                     # one exp shared by bce and sigmoid
    bce = jnp.maximum(xc, 0.0) - xc * t01 + jnp.log(1.0 + e)
    inv = pl.reciprocal(1.0 + e, approx=True)     # EUP slot; frees VALU
    p = jnp.where(xc >= 0.0, 1.0, e) * inv        # == sigmoid(xc)
    pt = p * t01 + (1.0 - p) * (1.0 - t01)
    return mask, 0.5 * (1.0 - pt) * bce


def _laplace_term(i, n_vectors):
    """components.Laplace for vector i (tanh-clamped log-b)."""
    def term(get_x, get_t):
        x1, x2 = get_x(1 + 2 * i), get_x(2 + 2 * i)
        xb = get_x(1 + 2 * n_vectors + i)
        t1, t2 = get_t(1 + 2 * i), get_t(2 + 2 * i)
        tb = get_t(1 + 2 * n_vectors + i)
        mask = jnp.logical_not(jnp.isnan(t1))
        norm = jnp.sqrt((x1 - t1) ** 2 + (x2 - t2) ** 2)
        logb = 3.0 * jnp.tanh(xb * (1.0 / 3.0))
        return mask, logb + (norm + tb) * jnp.exp(-logb)
    return term


def _scale_term(i, base):
    """components.Scale: relative L1 on softplus(x)."""
    def term(get_x, get_t):
        xs, ts = get_x(base + i), get_t(base + i)
        mask = jnp.logical_not(jnp.isnan(ts))
        # branch-free softplus: max(x,0) + log(1 + exp(-|x|))
        sp = jnp.maximum(xs, 0.0) + jnp.log(1.0 + jnp.exp(-jnp.abs(xs)))
        return mask, jnp.abs(sp - ts) * pl.reciprocal(0.1 + ts, approx=True)
    return term


def _offset_term(i):
    """SmoothL1 with r_smooth = 1.0 on offset vector i."""
    def term(get_x, get_t):
        x1, x2 = get_x(2 * i), get_x(2 * i + 1)
        t1, t2 = get_t(2 * i), get_t(2 * i + 1)
        mask = jnp.logical_not(jnp.isnan(t1))
        d = jnp.sqrt((x1 - t1) ** 2 + (x2 - t2) ** 2)
        return mask, jnp.where(d < 1.0, 0.5 * d * d, d - 0.5)
    return term


# --------------------------------------------------------------------------
# Generic masked-sum Pallas kernel
# --------------------------------------------------------------------------
def _masked_sum_kernel(x_ref, t_ref, out_ref, *, term_fns, hw, acc_lanes,
                       tile_rows, n_rows_total, blocks_per_core):
    """x_ref/t_ref: (tile_rows, C*hw) VMEM tiles; out_ref: (1, n_terms, 8, acc_lanes).

    The tile is streamed in vreg-resident (8-row, acc_lanes-lane) working sets;
    per-term accumulators stay in vregs (fori carry) across row groups and are
    flushed once per tile into the per-core resident output block.
    """
    n_terms = len(term_fns)
    n_groups = tile_rows // GROUP
    n_chunks = hw // acc_lanes

    @pl.when(pl.program_id(1) == 0)
    def _init():
        out_ref[...] = jnp.zeros_like(out_ref)

    # Unclamped logical block index: duplicated (clamp-DMA'd) blocks and ragged
    # tail rows are zeroed via the row-validity mask below.
    block_idx = pl.program_id(0) * blocks_per_core + pl.program_id(1)
    row_start = block_idx * tile_rows

    def group_step(g, accs):
        r0 = g * GROUP
        if not isinstance(r0, int):
            r0 = pl.multiple_of(r0, GROUP)
        rows = pl.ds(r0, GROUP)
        # cheap (8, 1) row validity; lane broadcast happens inside the select.
        gids = row_start + r0 + lax.broadcasted_iota(jnp.int32, (GROUP, 1), 0)
        row_valid = gids < n_rows_total

        accs = list(accs)
        for c0 in range(n_chunks):
            lane0 = c0 * acc_lanes

            def get_x(c, _lane0=lane0):
                return x_ref[rows, pl.ds(c * hw + _lane0, acc_lanes)].astype(jnp.float32)

            def get_t(c, _lane0=lane0):
                return t_ref[rows, pl.ds(c * hw + _lane0, acc_lanes)].astype(jnp.float32)

            for k, term in enumerate(term_fns):
                mask, loss = term(get_x, get_t)
                # keep a SELECT (never multiply-by-mask): NaN/Inf from masked
                # targets or garbage tail rows must not leak into the sum.
                accs[k] = accs[k] + jnp.where(jnp.logical_and(row_valid, mask),
                                              loss, 0.0)
        return tuple(accs)

    init = tuple(jnp.zeros((GROUP, acc_lanes), jnp.float32) for _ in range(n_terms))
    if n_groups <= STATIC_GROUP_UNROLL:
        accs = init
        for g in range(n_groups):
            accs = group_step(g, accs)
    else:
        accs = lax.fori_loop(0, n_groups, group_step, init)

    for k in range(n_terms):
        out_ref[0, k, :, :] += accs[k]


# --------------------------------------------------------------------------
# Launch helper
# --------------------------------------------------------------------------
def _masked_sum_launch(x2d, t2d, term_fns, hw, *, num_cores, max_tile_rows=None):
    """Masked per-term sums over 2-D [rows, C*hw] views; returns (n_terms,) f32."""
    n_rows, row_elems = x2d.shape
    assert n_rows % 8 == 0 and hw % 128 == 0 and row_elems % hw == 0
    n_terms = len(term_fns)
    acc_lanes = _pick_acc_lanes(hw)
    itemsize = jnp.dtype(x2d.dtype).itemsize

    tile = _pick_tile_rows(n_rows, row_elems * itemsize, itemsize)
    if max_tile_rows is not None:
        tile = max(8, min(tile, max_tile_rows) // 8 * 8)
    num_blocks = -(-n_rows // tile)
    cores = max(1, min(num_cores, num_blocks))    # tiny slabs stay on one core
    bpc = -(-num_blocks // cores)                 # blocks per core

    def in_map(c, i):
        # clamp so the DMA stays in bounds; the kernel's row-validity mask makes
        # duplicated / ragged tail blocks contribute exactly 0.
        return (jnp.minimum(c * bpc + i, num_blocks - 1), 0)

    kernel = functools.partial(
        _masked_sum_kernel, term_fns=tuple(term_fns), hw=hw, acc_lanes=acc_lanes,
        tile_rows=tile, n_rows_total=n_rows, blocks_per_core=bpc)

    tile_bytes = tile * row_elems * itemsize
    out_bytes = n_terms * 8 * acc_lanes * 4
    vmem_limit = int(min(MAX_VMEM_LIMIT,
                         max(MIN_VMEM_LIMIT,
                             4 * tile_bytes + 2 * out_bytes + (8 << 20))))

    sums = pl.pallas_call(
        kernel,
        out_shape=jax.ShapeDtypeStruct((cores, n_terms, 8, acc_lanes), jnp.float32),
        grid_spec=pltpu.PrefetchScalarGridSpec(
            num_scalar_prefetch=0,
            grid=(cores, bpc),
            in_specs=[pl.BlockSpec((tile, row_elems), in_map),
                      pl.BlockSpec((tile, row_elems), in_map)],
            out_specs=pl.BlockSpec((1, n_terms, 8, acc_lanes),
                                   lambda c, i: (c, 0, 0, 0)),
        ),
        # TODO(synk): on v7x, verify in xprof that the leading "parallel" axis is
        # sharded across both TensorCores; switch to pltpu.CORE_PARALLEL if not.
        compiler_params=pltpu.CompilerParams(
            dimension_semantics=("parallel", "arbitrary"),
            vmem_limit_bytes=vmem_limit),
    )(x2d, t2d)
    return jnp.sum(sums, axis=(0, 2, 3))


# --------------------------------------------------------------------------
# Wrapper (zero-copy reshapes when the layout is already lane/sublane aligned)
# --------------------------------------------------------------------------
def _as_lane_dense_2d(x3, t3):
    """[rows, C, HW] -> ([rows8, C*HWp], [rows8, C*HWp], HWp) lane-dense views.

    Pure reshapes when HW % 128 == 0 and rows % 8 == 0; otherwise pads
    (x with 0, t with NaN) so padded positions are masked out by the kernels.
    """
    rows, C, HW = x3.shape
    HWp = -(-HW // 128) * 128
    rows8 = -(-rows // 8) * 8
    if HWp != HW:
        # TODO(synk): this pad is a copy; align HW to 128 at the producer instead.
        x3 = jnp.pad(x3, ((0, 0), (0, 0), (0, HWp - HW)))
        t3 = jnp.pad(t3, ((0, 0), (0, 0), (0, HWp - HW)), constant_values=jnp.nan)
    if rows8 != rows:
        x3 = jnp.pad(x3, ((0, rows8 - rows), (0, 0), (0, 0)))
        t3 = jnp.pad(t3, ((0, rows8 - rows), (0, 0), (0, 0)), constant_values=jnp.nan)
    return x3.reshape(rows8, C * HWp), t3.reshape(rows8, C * HWp), HWp


def dcn_composite_loss(x, t, x_offset=None, t_offset=None, *,
                       n_vectors, n_scales, n_offsets, max_tile_rows=None):
    """Forward pass of DCNCompositeLoss.

    Returns [confidence, vec_1..vec_nv, scale_1..scale_ns, offset_1..offset_no].
    """
    B, F, C, H, W = x.shape
    assert C == 1 + 3 * n_vectors + n_scales
    assert t.shape == x.shape
    num_cores = _num_tensorcores()

    x2, t2, hw = _as_lane_dense_2d(x.reshape(B * F, C, H * W),
                                   t.reshape(B * F, C, H * W))
    term_fns = ([_bce_term]
                + [_laplace_term(i, n_vectors) for i in range(n_vectors)]
                + [_scale_term(i, 1 + 3 * n_vectors) for i in range(n_scales)])
    main = _masked_sum_launch(x2, t2, term_fns, hw, num_cores=num_cores,
                              max_tile_rows=max_tile_rows) / B
    losses = [main[k] for k in range(len(term_fns))]

    if n_offsets > 0:
        Bo, Co, Ho, Wo = x_offset.shape
        assert Co == 2 * n_offsets and t_offset.shape == x_offset.shape
        xo2, to2, hwo = _as_lane_dense_2d(x_offset.reshape(Bo, Co, Ho * Wo),
                                          t_offset.reshape(Bo, Co, Ho * Wo))
        off_fns = [_offset_term(i) for i in range(n_offsets)]
        off = _masked_sum_launch(xo2, to2, off_fns, hwo, num_cores=num_cores,
                                 max_tile_rows=max_tile_rows) / Bo
        losses += [off[k] for k in range(n_offsets)]

    # TODO(synk): the PyTorch module returns None for a loss term whose mask is
    # all-False (dynamic shape); here the masked sum is simply 0.
    return losses


# --------------------------------------------------------------------------
# Pure-JAX reference (mirrors the module semantics, written independently)
# --------------------------------------------------------------------------
def reference_losses(x, t, x_off, t_off, n_vectors, n_scales, n_offsets):
    B = x.shape[0]
    msum = lambda m, v: jnp.sum(jnp.where(m, v, 0.0))

    xc, tc = x[:, :, 0], t[:, :, 0]
    m = ~jnp.isnan(tc)
    t01 = jnp.where(jnp.where(m, tc, 0.0) > 0.0, 1.0, 0.0)
    bce = jnp.logaddexp(0.0, xc) - xc * t01
    p = jax.nn.sigmoid(xc)
    pt = p * t01 + (1.0 - p) * (1.0 - t01)
    losses = [msum(m, 0.5 * (1.0 - pt) * bce) / B]

    nv = n_vectors
    for i in range(nv):
        x1, x2v, xb = x[:, :, 1 + 2 * i], x[:, :, 2 + 2 * i], x[:, :, 1 + 2 * nv + i]
        t1, t2v, tb = t[:, :, 1 + 2 * i], t[:, :, 2 + 2 * i], t[:, :, 1 + 2 * nv + i]
        m = ~jnp.isnan(t1)
        t1s, t2s, tbs = (jnp.where(m, v, 0.0) for v in (t1, t2v, tb))
        norm = jnp.sqrt((x1 - t1s) ** 2 + (x2v - t2s) ** 2)
        logb = 3.0 * jnp.tanh(xb / 3.0)
        losses.append(msum(m, logb + (norm + tbs) * jnp.exp(-logb)) / B)

    for i in range(n_scales):
        xs, ts = x[:, :, 1 + 3 * nv + i], t[:, :, 1 + 3 * nv + i]
        m = ~jnp.isnan(ts)
        tss = jnp.where(m, ts, 0.0)
        sp = jnp.logaddexp(xs, 0.0)
        losses.append(msum(m, jnp.abs(sp - tss) / (0.1 + tss)) / B)

    for i in range(n_offsets):
        x1, x2v = x_off[:, 2 * i], x_off[:, 2 * i + 1]
        t1, t2v = t_off[:, 2 * i], t_off[:, 2 * i + 1]
        m = ~jnp.isnan(t1)
        t1s, t2s = jnp.where(m, t1, 0.0), jnp.where(m, t2v, 0.0)
        d = jnp.sqrt((x1 - t1s) ** 2 + (x2v - t2s) ** 2)
        losses.append(msum(m, jnp.where(d < 1.0, 0.5 * d * d, d - 0.5)) / x_off.shape[0])
    return losses


# --------------------------------------------------------------------------
if __name__ == "__main__":
    def run_case(key, B, F, H, W, NV, NS, NO, max_tile_rows=None):
        C = 1 + 3 * NV + NS
        k = jax.random.split(key, 10)
        x = jax.random.normal(k[0], (B, F, C, H, W), jnp.float32)
        x_offset = jax.random.normal(k[1], (B, 2 * NO, H, W), jnp.float32)

        # targets (NaN marks unannotated positions, exactly as in the module)
        t_conf = jax.random.bernoulli(k[2], 0.3, (B, F, 1, H, W)).astype(jnp.float32)
        t_vec = 2.0 * jax.random.normal(k[3], (B, F, 2 * NV, H, W), jnp.float32)
        t_b = 0.5 * jnp.abs(jax.random.normal(k[4], (B, F, NV, H, W), jnp.float32)) + 0.1
        t_scl = jnp.abs(jax.random.normal(k[5], (B, F, NS, H, W), jnp.float32)) + 0.5
        t = jnp.concatenate([t_conf, t_vec, t_b, t_scl], axis=2)

        conf_nan = jax.random.bernoulli(k[6], 0.1, (B, F, 1, H, W))
        ann_nan = jax.random.bernoulli(k[7], 0.5, (B, F, 1, H, W))
        nan_mask = jnp.concatenate(
            [conf_nan] + [ann_nan] * (2 * NV) + [ann_nan] * NV + [ann_nan] * NS, axis=2)
        t = jnp.where(nan_mask, jnp.nan, t)

        t_offset = 2.0 * jax.random.normal(k[8], (B, 2 * NO, H, W), jnp.float32)
        off_nan = jax.random.bernoulli(k[9], 0.5, (B, 1, H, W))
        t_offset = jnp.where(jnp.concatenate([off_nan] * (2 * NO), axis=1),
                             jnp.nan, t_offset)

        losses = dcn_composite_loss(x, t, x_offset, t_offset,
                                    n_vectors=NV, n_scales=NS, n_offsets=NO,
                                    max_tile_rows=max_tile_rows)
        losses = [jax.block_until_ready(l) for l in losses]

        ref = reference_losses(x, t, x_offset, t_offset, NV, NS, NO)
        for got, want in zip(losses, ref):
            assert bool(jnp.isfinite(got)), "found a loss that is not finite"
            assert jnp.allclose(got, want, rtol=5e-3, atol=1e-2), (got, want)

    key = jax.random.PRNGKey(0)
    k1, k2 = jax.random.split(key)
    # raf-style head at small shapes: n_vectors=1, n_scales=1, n_offsets=1
    run_case(k1, B=2, F=4, H=16, W=16, NV=1, NS=1, NO=1)
    # exercises lane padding (HW=100 -> 128), ragged tail block, in-kernel fori path
    run_case(k2, B=3, F=24, H=10, W=10, NV=2, NS=2, NO=2, max_tile_rows=48)
    print("KERNEL_OK")
</pallas_src>

<mosaic_0001>
module attributes {stable_mosaic.version = 11 : i64} {
  func.func @_masked_sum_kernel(%arg0: i32, %arg1: i32, %arg2: memref<8x1280xf32, #tpu.memory_space<vmem>>, %arg3: memref<8x1280xf32, #tpu.memory_space<vmem>>, %arg4: memref<1x3x8x256xf32, #tpu.memory_space<vmem>>) attributes {dimension_semantics = [#tpu.dimension_semantics<parallel>, #tpu.dimension_semantics<arbitrary>], iteration_bounds = array<i64: 1, 1>, scalar_prefetch = 0 : i64, scratch_operands = 0 : i64, tpu.core_type = #tpu.core_type<tc>, window_params = [{transform_indices = @transform_0, window_bounds = array<i64: 8, 1280>}, {transform_indices = @transform_1, window_bounds = array<i64: 8, 1280>}, {transform_indices = @transform_2, window_bounds = array<i64: 1, 3, 8, 256>}]} {
    %c0_i32 = arith.constant 0 : i32
    %0 = arith.cmpi eq, %arg1, %c0_i32 : i32
    %1 = arith.extui %0 : i1 to i32
    %c0_i32_0 = arith.constant 0 : i32
    %2 = arith.cmpi ne, %1, %c0_i32_0 : i32
    scf.if %2 {
      %cst_68 = arith.constant 0.000000e+00 : f32
      %134 = vector.broadcast %cst_68 : f32 to vector<1x3x8x256xf32>
      %c0_69 = arith.constant 0 : index
      %c0_70 = arith.constant 0 : index
      %c0_71 = arith.constant 0 : index
      %c0_72 = arith.constant 0 : index
      %135 = vector.load %arg4[%c0_69, %c0_70, %c0_71, %c0_72] : memref<1x3x8x256xf32, #tpu.memory_space<vmem>>, vector<1x3x8x256xf32>
      tpu.vector_store %arg4[%c0_69, %c0_70, %c0_71, %c0_72], %134 {strides = array<i32>} : memref<1x3x8x256xf32, #tpu.memory_space<vmem>>, vector<1x3x8x256xf32>,
    } else {
    }
    %c1_i32 = arith.constant 1 : i32
    %3 = arith.muli %arg0, %c1_i32 : i32
    %4 = arith.addi %3, %arg1 : i32
    %c8_i32 = arith.constant 8 : i32
    %5 = arith.muli %4, %c8_i32 : i32
    %cst = arith.constant 0.000000e+00 : f32
    %6 = vector.broadcast %cst : f32 to vector<8x256xf32>
    %cst_1 = arith.constant 0.000000e+00 : f32
    %7 = vector.broadcast %cst_1 : f32 to vector<8x256xf32>
    %cst_2 = arith.constant 0.000000e+00 : f32
    %8 = vector.broadcast %cst_2 : f32 to vector<8x256xf32>
    %c0_i32_3 = arith.constant 0 : i32
    %9 = arith.addi %5, %c0_i32_3 : i32
    %10 = tpu.iota {dimensions = array<i32: 0>} : vector<8x1xi32>
    %11 = vector.broadcast %9 : i32 to vector<8x1xi32>
    %12 = arith.addi %11, %10 : vector<8x1xi32>
    %c8_i32_4 = arith.constant 8 : i32
    %13 = vector.broadcast %c8_i32_4 : i32 to vector<8x1xi32>
    %14 = arith.cmpi slt, %12, %13 : vector<8x1xi32>
    %c0 = arith.constant 0 : index
    %c0_5 = arith.constant 0 : index
    %15 = vector.load %arg2[%c0, %c0_5] : memref<8x1280xf32, #tpu.memory_space<vmem>>, vector<8x256xf32>
    %c0_6 = arith.constant 0 : index
    %c0_7 = arith.constant 0 : index
    %16 = vector.load %arg3[%c0_6, %c0_7] : memref<8x1280xf32, #tpu.memory_space<vmem>>, vector<8x256xf32>
    %17 = arith.cmpf one, %16, %16 : vector<8x256xf32>
    %cst_8 = arith.constant dense<true> : vector<8x256xi1>
    %18 = arith.xori %17, %cst_8 : vector<8x256xi1>
    %cst_9 = arith.constant 0.000000e+00 : f32
    %19 = vector.broadcast %cst_9 : f32 to vector<8x256xf32>
    %20 = arith.cmpf ogt, %16, %19 : vector<8x256xf32>
    %cst_10 = arith.constant 1.000000e+00 : f32
    %cst_11 = arith.constant 0.000000e+00 : f32
    %21 = vector.broadcast %cst_10 : f32 to vector<8x256xf32>
    %22 = vector.broadcast %cst_11 : f32 to vector<8x256xf32>
    %23 = arith.select %20, %21, %22 : vector<8x256xi1>, vector<8x256xf32>
    %24 = math.absf %15 : vector<8x256xf32>
    %cst_12 = arith.constant 0.000000e+00 : f32
    %25 = vector.broadcast %cst_12 : f32 to vector<8x256xf32>
    %26 = arith.subf %25, %24 : vector<8x256xf32>
    %27 = math.exp %26 : vector<8x256xf32>
    %cst_13 = arith.constant 0.000000e+00 : f32
    %28 = vector.broadcast %cst_13 : f32 to vector<8x256xf32>
    %29 = arith.maximumf %15, %28 : vector<8x256xf32>
    %30 = arith.mulf %15, %23 : vector<8x256xf32>
    %31 = arith.subf %29, %30 : vector<8x256xf32>
    %cst_14 = arith.constant 1.000000e+00 : f32
    %32 = vector.broadcast %cst_14 : f32 to vector<8x256xf32>
    %33 = arith.addf %32, %27 : vector<8x256xf32>
    %34 = math.log %33 : vector<8x256xf32>
    %35 = arith.addf %31, %34 : vector<8x256xf32>
    %cst_15 = arith.constant 1.000000e+00 : f32
    %36 = vector.broadcast %cst_15 : f32 to vector<8x256xf32>
    %37 = arith.addf %36, %27 : vector<8x256xf32>
    %38 = tpu.reciprocal %37 {approx = true} : vector<8x256xf32> -> vector<8x256xf32>
    %cst_16 = arith.constant 0.000000e+00 : f32
    %39 = vector.broadcast %cst_16 : f32 to vector<8x256xf32>
    %40 = arith.cmpf oge, %15, %39 : vector<8x256xf32>
    %cst_17 = arith.constant 1.000000e+00 : f32
    %41 = vector.broadcast %cst_17 : f32 to vector<8x256xf32>
    %42 = arith.select %40, %41, %27 : vector<8x256xi1>, vector<8x256xf32>
    %43 = arith.mulf %42, %38 : vector<8x256xf32>
    %44 = arith.mulf %43, %23 : vector<8x256xf32>
    %cst_18 = arith.constant 1.000000e+00 : f32
    %45 = vector.broadcast %cst_18 : f32 to vector<8x256xf32>
    %46 = arith.subf %45, %43 : vector<8x256xf32>
    %cst_19 = arith.constant 1.000000e+00 : f32
    %47 = vector.broadcast %cst_19 : f32 to vector<8x256xf32>
    %48 = arith.subf %47, %23 : vector<8x256xf32>
    %49 = arith.mulf %46, %48 : vector<8x256xf32>
    %50 = arith.addf %44, %49 : vector<8x256xf32>
    %cst_20 = arith.constant 1.000000e+00 : f32
    %51 = vector.broadcast %cst_20 : f32 to vector<8x256xf32>
    %52 = arith.subf %51, %50 : vector<8x256xf32>
    %cst_21 = arith.constant 5.000000e-01 : f32
    %53 = vector.broadcast %cst_21 : f32 to vector<8x256xf32>
    %54 = arith.mulf %53, %52 : vector<8x256xf32>
    %55 = arith.mulf %54, %35 : vector<8x256xf32>
    %56 = vector.broadcast %14 : vector<8x1xi1> to vector<8x256xi1>
    %57 = arith.andi %56, %18 : vector<8x256xi1>
    %cst_22 = arith.constant 0.000000e+00 : f32
    %58 = vector.broadcast %cst_22 : f32 to vector<8x256xf32>
    %59 = arith.select %57, %55, %58 : vector<8x256xi1>, vector<8x256xf32>
    %60 = arith.addf %6, %59 : vector<8x256xf32>
    %c0_23 = arith.constant 0 : index
    %c256 = arith.constant 256 : index
    %61 = vector.load %arg2[%c0_23, %c256] : memref<8x1280xf32, #tpu.memory_space<vmem>>, vector<8x256xf32>
    %c0_24 = arith.constant 0 : index
    %c512 = arith.constant 512 : index
    %62 = vector.load %arg2[%c0_24, %c512] : memref<8x1280xf32, #tpu.memory_space<vmem>>, vector<8x256xf32>
    %c0_25 = arith.constant 0 : index
    %c768 = arith.constant 768 : index
    %63 = vector.load %arg2[%c0_25, %c768] : memref<8x1280xf32, #tpu.memory_space<vmem>>, vector<8x256xf32>
    %c0_26 = arith.constant 0 : index
    %c256_27 = arith.constant 256 : index
    %64 = vector.load %arg3[%c0_26, %c256_27] : memref<8x1280xf32, #tpu.memory_space<vmem>>, vector<8x256xf32>
    %c0_28 = arith.constant 0 : index
    %c512_29 = arith.constant 512 : index
    %65 = vector.load %arg3[%c0_28, %c512_29] : memref<8x1280xf32, #tpu.memory_space<vmem>>, vector<8x256xf32>
    %c0_30 = arith.constant 0 : index
    %c768_31 = arith.constant 768 : index
    %66 = vector.load %arg3[%c0_30, %c768_31] : memref<8x1280xf32, #tpu.memory_space<vmem>>, vector<8x256xf32>
    %67 = arith.cmpf one, %64, %64 : vector<8x256xf32>
    %cst_32 = arith.constant dense<true> : vector<8x256xi1>
    %68 = arith.xori %67, %cst_32 : vector<8x256xi1>
    %69 = arith.subf %61, %64 : vector<8x256xf32>
    %70 = arith.mulf %69, %69 : vector<8x256xf32>
    %71 = arith.subf %62, %65 : vector<8x256xf32>
    %72 = arith.mulf %71, %71 : vector<8x256xf32>
    %73 = arith.addf %70, %72 : vector<8x256xf32>
    %74 = math.sqrt %73 : vector<8x256xf32>
    %cst_33 = arith.constant 0.333333343 : f32
    %75 = vector.broadcast %cst_33 : f32 to vector<8x256xf32>
    %76 = arith.mulf %63, %75 : vector<8x256xf32>
    %77 = math.tanh %76 : vector<8x256xf32>
    %cst_34 = arith.constant 3.000000e+00 : f32
    %78 = vector.broadcast %cst_34 : f32 to vector<8x256xf32>
    %79 = arith.mulf %78, %77 : vector<8x256xf32>
    %80 = arith.addf %74, %66 : vector<8x256xf32>
    %cst_35 = arith.constant 0.000000e+00 : f32
    %81 = vector.broadcast %cst_35 : f32 to vector<8x256xf32>
    %82 = arith.subf %81, %79 : vector<8x256xf32>
    %83 = math.exp %82 : vector<8x256xf32>
    %84 = arith.mulf %80, %83 : vector<8x256xf32>
    %85 = arith.addf %79, %84 : vector<8x256xf32>
    %86 = vector.broadcast %14 : vector<8x1xi1> to vector<8x256xi1>
    %87 = arith.andi %86, %68 : vector<8x256xi1>
    %cst_36 = arith.constant 0.000000e+00 : f32
    %88 = vector.broadcast %cst_36 : f32 to vector<8x256xf32>
    %89 = arith.select %87, %85, %88 : vector<8x256xi1>, vector<8x256xf32>
    %90 = arith.addf %7, %89 : vector<8x256xf32>
    %c0_37 = arith.constant 0 : index
    %c1024 = arith.constant 1024 : index
    %91 = vector.load %arg2[%c0_37, %c1024] : memref<8x1280xf32, #tpu.memory_space<vmem>>, vector<8x256xf32>
    %c0_38 = arith.constant 0 : index
    %c1024_39 = arith.constant 1024 : index
    %92 = vector.load %arg3[%c0_38, %c1024_39] : memref<8x1280xf32, #tpu.memory_space<vmem>>, vector<8x256xf32>
    %93 = arith.cmpf one, %92, %92 : vector<8x256xf32>
    %cst_40 = arith.constant dense<true> : vector<8x256xi1>
    %94 = arith.xori %93, %cst_40 : vector<8x256xi1>
    %cst_41 = arith.constant 0.000000e+00 : f32
    %95 = vector.broadcast %cst_41 : f32 to vector<8x256xf32>
    %96 = arith.maximumf %91, %95 : vector<8x256xf32>
    %97 = math.absf %91 : vector<8x256xf32>
    %cst_42 = arith.constant 0.000000e+00 : f32
    %98 = vector.broadcast %cst_42 : f32 to vector<8x256xf32>
    %99 = arith.subf %98, %97 : vector<8x256xf32>
    %100 = math.exp %99 : vector<8x256xf32>
    %cst_43 = arith.constant 1.000000e+00 : f32
    %101 = vector.broadcast %cst_43 : f32 to vector<8x256xf32>
    %102 = arith.addf %101, %100 : vector<8x256xf32>
    %103 = math.log %102 : vector<8x256xf32>
    %104 = arith.addf %96, %103 : vector<8x256xf32>
    %105 = arith.subf %104, %92 : vector<8x256xf32>
    %106 = math.absf %105 : vector<8x256xf32>
    %cst_44 = arith.constant 1.000000e-01 : f32
    %107 = vector.broadcast %cst_44 : f32 to vector<8x256xf32>
    %108 = arith.addf %107, %92 : vector<8x256xf32>
    %109 = tpu.reciprocal %108 {approx = true} : vector<8x256xf32> -> vector<8x256xf32>
    %110 = arith.mulf %106, %109 : vector<8x256xf32>
    %111 = vector.broadcast %14 : vector<8x1xi1> to vector<8x256xi1>
    %112 = arith.andi %111, %94 : vector<8x256xi1>
    %cst_45 = arith.constant 0.000000e+00 : f32
    %113 = vector.broadcast %cst_45 : f32 to vector<8x256xf32>
    %114 = arith.select %112, %110, %113 : vector<8x256xi1>, vector<8x256xf32>
    %115 = arith.addf %8, %114 : vector<8x256xf32>
    %c0_46 = arith.constant 0 : index
    %c0_47 = arith.constant 0 : index
    %c0_48 = arith.constant 0 : index
    %c0_49 = arith.constant 0 : index
    %116 = vector.load %arg4[%c0_46, %c0_47, %c0_48, %c0_49] : memref<1x3x8x256xf32, #tpu.memory_space<vmem>>, vector<1x1x8x256xf32>
    %117 = vector.shape_cast %116 : vector<1x1x8x256xf32> to vector<8x256xf32>
    %118 = arith.addf %117, %60 : vector<8x256xf32>
    %c0_50 = arith.constant 0 : index
    %c0_51 = arith.constant 0 : index
    %c0_52 = arith.constant 0 : index
    %c0_53 = arith.constant 0 : index
    %119 = vector.load %arg4[%c0_50, %c0_51, %c0_52, %c0_53] : memref<1x3x8x256xf32, #tpu.memory_space<vmem>>, vector<1x1x8x256xf32>
    %120 = vector.shape_cast %119 : vector<1x1x8x256xf32> to vector<8x256xf32>
    %121 = vector.shape_cast %118 : vector<8x256xf32> to vector<1x1x8x256xf32>
    tpu.vector_store %arg4[%c0_50, %c0_51, %c0_52, %c0_53], %121 {strides = array<i32>} : memref<1x3x8x256xf32, #tpu.memory_space<vmem>>, vector<1x1x8x256xf32>,
    %c0_54 = arith.constant 0 : index
    %c1 = arith.constant 1 : index
    %c0_55 = arith.constant 0 : index
    %c0_56 = arith.constant 0 : index
    %122 = vector.load %arg4[%c0_54, %c1, %c0_55, %c0_56] : memref<1x3x8x256xf32, #tpu.memory_space<vmem>>, vector<1x1x8x256xf32>
    %123 = vector.shape_cast %122 : vector<1x1x8x256xf32> to vector<8x256xf32>
    %124 = arith.addf %123, %90 : vector<8x256xf32>
    %c0_57 = arith.constant 0 : index
    %c1_58 = arith.constant 1 : index
    %c0_59 = arith.constant 0 : index
    %c0_60 = arith.constant 0 : index
    %125 = vector.load %arg4[%c0_57, %c1_58, %c0_59, %c0_60] : memref<1x3x8x256xf32, #tpu.memory_space<vmem>>, vector<1x1x8x256xf32>
    %126 = vector.shape_cast %125 : vector<1x1x8x256xf32> to vector<8x256xf32>
    %127 = vector.shape_cast %124 : vector<8x256xf32> to vector<1x1x8x256xf32>
    tpu.vector_store %arg4[%c0_57, %c1_58, %c0_59, %c0_60], %127 {strides = array<i32>} : memref<1x3x8x256xf32, #tpu.memory_space<vmem>>, vector<1x1x8x256xf32>,
    %c0_61 = arith.constant 0 : index
    %c2 = arith.constant 2 : index
    %c0_62 = arith.constant 0 : index
    %c0_63 = arith.constant 0 : index
    %128 = vector.load %arg4[%c0_61, %c2, %c0_62, %c0_63] : memref<1x3x8x256xf32, #tpu.memory_space<vmem>>, vector<1x1x8x256xf32>
    %129 = vector.shape_cast %128 : vector<1x1x8x256xf32> to vector<8x256xf32>
    %130 = arith.addf %129, %115 : vector<8x256xf32>
    %c0_64 = arith.constant 0 : index
    %c2_65 = arith.constant 2 : index
    %c0_66 = arith.constant 0 : index
    %c0_67 = arith.constant 0 : index
    %131 = vector.load %arg4[%c0_64, %c2_65, %c0_66, %c0_67] : memref<1x3x8x256xf32, #tpu.memory_space<vmem>>, vector<1x1x8x256xf32>
    %132 = vector.shape_cast %131 : vector<1x1x8x256xf32> to vector<8x256xf32>
    %133 = vector.shape_cast %130 : vector<8x256xf32> to vector<1x1x8x256xf32>
    tpu.vector_store %arg4[%c0_64, %c2_65, %c0_66, %c0_67], %133 {strides = array<i32>} : memref<1x3x8x256xf32, #tpu.memory_space<vmem>>, vector<1x1x8x256xf32>,
    return
  }
  func.func @transform_0(%arg0: i32, %arg1: i32) -> (i32, i32) {
    %c1_i32 = arith.constant 1 : i32
    %0 = arith.muli %arg0, %c1_i32 : i32
    %1 = arith.addi %0, %arg1 : i32
    %c0_i32 = arith.constant 0 : i32
    %2 = arith.minsi %1, %c0_i32 : i32
    %c0_i32_0 = arith.constant 0 : i32
    %c0_i32_1 = arith.constant 0 : i32
    return %2, %c0_i32_0 : i32, i32
  }
  func.func @transform_1(%arg0: i32, %arg1: i32) -> (i32, i32) {
    %c1_i32 = arith.constant 1 : i32
    %0 = arith.muli %arg0, %c1_i32 : i32
    %1 = arith.addi %0, %arg1 : i32
    %c0_i32 = arith.constant 0 : i32
    %2 = arith.minsi %1, %c0_i32 : i32
    %c0_i32_0 = arith.constant 0 : i32
    %c0_i32_1 = arith.constant 0 : i32
    return %2, %c0_i32_0 : i32, i32
  }
  func.func @transform_2(%arg0: i32, %arg1: i32) -> (i32, i32, i32, i32) {
    %c0_i32 = arith.constant 0 : i32
    %c0_i32_0 = arith.constant 0 : i32
    %c0_i32_1 = arith.constant 0 : i32
    %c0_i32_2 = arith.constant 0 : i32
    return %arg0, %c0_i32, %c0_i32_0, %c0_i32_1 : i32, i32, i32, i32
  }
}

</mosaic_0001>

<llo_original>
// kernel: tpu_custom_call.1
$region0: #{tpu_custom_call.1}
  #allocation0 [shape = 'u32[]', space=smem, size = 0x4, offset = 0x4, fixed_abs, tag = 'smem constant byte address 0x4 - core index']
  #allocation1 [shape = 'u32[72,128]{1,0:T(1,128)}', space=vmem, size = 0x9000, scoped, tag = 'internal scratch']
  %s0 = inlined_call_operand.hbm [shape: f32[8,1280], index: 0, kind: input, shape index: {}]
  %s1 = inlined_call_operand.hbm [shape: f32[8,1280], index: 1, kind: input, shape index: {}]
  %s2 = inlined_call_operand.hbm [shape: f32[1,3,8,256], index: 2, kind: output, shape index: {}]
  %s3 = sld [smem:[#allocation0]]
  $region30: #{tpu_custom_call.1} parent=0
    _
  %s5 = ssub.s32 1, %s3
  %s6 = scalar_select 0, %s5, %s3
  $region1: #{tpu_custom_call.1} parent=0
    #allocation2 [shape = 'u8[40960]{0}', space=vmem, size = 0xa000, scoped, tag = 'input window, operand 0, single buffered']
    #allocation3 [shape = 's32[1]{0}', space=sflag, size = 0x4, scoped, tag = 'scoped memory for tpu_custom_call.1']
    #allocation4 [shape = 's32[1]{0}', space=sflag, size = 0x4, scoped, tag = 'scoped memory for tpu_custom_call.1']
    #allocation5 [shape = 'u8[40960]{0}', space=vmem, size = 0xa000, scoped, tag = 'input window, operand 1, single buffered']
    #allocation6 [shape = 's32[1]{0}', space=sflag, size = 0x4, scoped, tag = 'scoped memory for tpu_custom_call.1']
    #allocation7 [shape = 'u8[24576]{0}', space=vmem, size = 0x6000, scoped, tag = 'output window, operand 0, single buffered']
    %7 = vsyncpa [#allocation3], 0
    %8 = vsyncpa [#allocation6], 0
    %9 = vsyncpa [#allocation4], 0
    // Predicated region
    $region2: #{tpu_custom_call.1} parent=1 // pred_check
      _
    $region3: #{tpu_custom_call.1} parent=1 // pred_check_branch
      %11 = sbr.rel (0) target = $region5
    $region4: #{tpu_custom_call.1} parent=1 // pred_region
      %s12 = sadd.s32 0, 0
      %p13 = scmp.lt.s32.totalorder %s12, 0
      %s14 = scalar_select %p13, %s12, 0
      %16 = vsyncadd [#allocation3], 0
      %s17 = smul.addr %s14, 10
      %s18 = smul.addr %s17, 8
      %s19 = scalar_lea.hbm %s0, %s18
      %s21 = sshll.u32 %s19, 4
      %s22 = int_to_ptr.hbm [resolvable:$true] %s21
      %s23 = sshll.u32 [#allocation2], 4
      %s24 = int_to_ptr.vmem [resolvable:$true] %s23
      %26 = dma.hbm_to_vmem [thread:$0]  %s22, 1280, %s24, [#allocation3]
    $region5: #{tpu_custom_call.1} parent=1 // pred_fallthru
      _
    // Predicated region
    $region6: #{tpu_custom_call.1} parent=1 // pred_check
      _
    $region7: #{tpu_custom_call.1} parent=1 // pred_check_branch
      %28 = sbr.rel (0) target = $region9
    $region8: #{tpu_custom_call.1} parent=1 // pred_region
      %s29 = sadd.s32 0, 0
      %p30 = scmp.lt.s32.totalorder %s29, 0
      %s31 = scalar_select %p30, %s29, 0
      %33 = vsyncadd [#allocation6], 0
      %s34 = smul.addr %s31, 10
      %s35 = smul.addr %s34, 8
      %s36 = scalar_lea.hbm %s1, %s35
      %s38 = sshll.u32 %s36, 4
      %s39 = int_to_ptr.hbm [resolvable:$true] %s38
      %s40 = sshll.u32 [#allocation5], 4
      %s41 = int_to_ptr.vmem [resolvable:$true] %s40
      %43 = dma.hbm_to_vmem [thread:$0]  %s39, 1280, %s41, [#allocation6]
    $region9: #{tpu_custom_call.1} parent=1 // pred_fallthru
      _
    // Predicated region
    $region10: #{tpu_custom_call.1} parent=1 // pred_check
      _
    $region11: #{tpu_custom_call.1} parent=1 // pred_check_branch
      %45 = sbr.rel (0) target = $region13
    $region12: #{tpu_custom_call.1} parent=1 // pred_region
      %47 = dma.done [#allocation3], 1280
    $region13: #{tpu_custom_call.1} parent=1 // pred_fallthru
      _
    // Predicated region
    $region14: #{tpu_custom_call.1} parent=1 // pred_check
      _
    $region15: #{tpu_custom_call.1} parent=1 // pred_check_branch
      %49 = sbr.rel (0) target = $region17
    $region16: #{tpu_custom_call.1} parent=1 // pred_region
      %51 = dma.done [#allocation6], 1280
    $region17: #{tpu_custom_call.1} parent=1 // pred_fallthru
      _
    %s52 = sadd.s32 0, 0
    %p53 = scmp.lt.s32.totalorder %s52, 0
    %s54 = scalar_select %p53, %s52, 0
    %s55 = sadd.s32 0, 0
    %p56 = scmp.lt.s32.totalorder %s55, 0
    %s57 = scalar_select %p56, %s55, 0
    %p58 = scmp.eq.s32.totalorder 0, 0
    // Predicated region
    $region18: #{tpu_custom_call.1} parent=1 // pred_check
      %p59 = pneg %p58
    $region19: #{tpu_custom_call.1} parent=1 // pred_check_branch
      %61 = sbr.rel (%p59) target = $region21
    $region20: #{tpu_custom_call.1} parent=1 // pred_region
      %62 = vst [vmem:[#allocation7] sm:$0xff] 0.0
      %63 = vst [vmem:[#allocation7 + $0x8] sm:$0xff] 0.0
      %64 = vst [vmem:[#allocation7 + $0x10] sm:$0xff] 0.0
      %65 = vst [vmem:[#allocation7 + $0x18] sm:$0xff] 0.0
      %66 = vst [vmem:[#allocation7 + $0x20] sm:$0xff] 0.0
      %67 = vst [vmem:[#allocation7 + $0x28] sm:$0xff] 0.0
    $region21: #{tpu_custom_call.1} parent=1 // pred_fallthru
      _
    %s68 = sadd.s32 0, 0
    %s69 = smul.u32 %s68, 8
    %v70 = vlaneseq
    %v71 = vshrl.u32 %v70, 7
    %v72 = vstv %s69
    %v73 = vadd.s32 %v72, %v71
    %vm74 = vcmp.lt.s32.totalorder %v73, 8
    %v75 = vld [vmem:[#allocation2] sm:$0xff]
    %v76 = vld [vmem:[#allocation2 + $0x8] sm:$0xff]
    %v77 = vld [vmem:[#allocation5] sm:$0xff]
    %v78 = vld [vmem:[#allocation5 + $0x8] sm:$0xff]
    %vm79 = vcmp.ne.f32.partialorder %v77, %v77
    %vm80 = vcmp.ne.f32.partialorder %v78, %v78
    %vm81 = vmxor %vm79, 1
    %vm82 = vmxor %vm80, 1
    %vm83 = vcmp.gt.f32.partialorder %v77, 0.0
    %vm84 = vcmp.gt.f32.partialorder %v78, 0.0
    %v85 = vsel %vm83, 1.0, 0.0
    %v86 = vsel %vm84, 1.0, 0.0
    %v87 = vand.u32 2147483647, %v75
    %v88 = vand.u32 2147483647, %v76
    %v89 = vsub.f32 0.0, %v87
    %v90 = vsub.f32 0.0, %v88
    %v91 = vmul.f32 %v89, 1.442695
    %v92 = vpow.pop %v91
    %v93 = vmul.f32 %v90, 1.442695
    %v94 = vpow.pop %v93
    %v95 = vmax.f32 %v75, 0.0
    %v96 = vmax.f32 %v76, 0.0
    %v97 = vmul.f32 %v75, %v85
    %v98 = vmul.f32 %v76, %v86
    %v99 = vsub.f32 %v95, %v97
    %v100 = vsub.f32 %v96, %v98
    %v101 = vadd.f32 %v92, 1.0
    %v102 = vadd.f32 %v94, 1.0
    %v103 = vlog2.pop %v101
    %v104 = vmul.f32 %v103, 0.6931472
    %v105 = vlog2.pop %v102
    %v106 = vmul.f32 %v105, 0.6931472
    %v107 = vadd.f32 %v99, %v104
    %v108 = vadd.f32 %v100, %v106
    %v109 = vrcp.pop %v101
    %v110 = vrcp.pop %v102
    %vm111 = vcmp.ge.f32.partialorder %v75, 0.0
    %vm112 = vcmp.ge.f32.partialorder %v76, 0.0
    %v113 = vsel %vm111, 1.0, %v92
    %v114 = vsel %vm112, 1.0, %v94
    %v115 = vmul.f32 %v113, %v109
    %v116 = vmul.f32 %v114, %v110
    %v117 = vmul.f32 %v115, %v85
    %v118 = vmul.f32 %v116, %v86
    %v119 = vsub.f32 1.0, %v115
    %v120 = vsub.f32 1.0, %v116
    %v121 = vsub.f32 1.0, %v85
    %v122 = vsub.f32 1.0, %v86
    %v123 = vmul.f32 %v119, %v121
    %v124 = vmul.f32 %v120, %v122
    %v125 = vadd.f32 %v117, %v123
    %v126 = vadd.f32 %v118, %v124
    %v127 = vsub.f32 1.0, %v125
    %v128 = vsub.f32 1.0, %v126
    %v129 = vmul.f32 %v127, 0.5
    %v130 = vmul.f32 %v128, 0.5
    %v131 = vmul.f32 %v129, %v107
    %v132 = vmul.f32 %v130, %v108
    %v133 = vsel %vm74, 1, 0
    %vm134 = vcmp.eq.s32.totalorder %v133, 1
    %vm135 = vmand %vm134, %vm81
    %vm136 = vmand %vm134, %vm82
    %v137 = vsel %vm135, %v131, 0.0
    %v138 = vsel %vm136, %v132, 0.0
    %v139 = vadd.f32 %v137, 0.0
    %v140 = vadd.f32 %v138, 0.0
    %v141 = vld [vmem:[#allocation2 + $0x10] sm:$0xff]
    %v142 = vld [vmem:[#allocation2 + $0x18] sm:$0xff]
    %v143 = vld [vmem:[#allocation2 + $0x20] sm:$0xff]
    %v144 = vld [vmem:[#allocation2 + $0x28] sm:$0xff]
    %v145 = vld [vmem:[#allocation2 + $0x30] sm:$0xff]
    %v146 = vld [vmem:[#allocation2 + $0x38] sm:$0xff]
    %v147 = vld [vmem:[#allocation5 + $0x10] sm:$0xff]
    %v148 = vld [vmem:[#allocation5 + $0x18] sm:$0xff]
    %v149 = vld [vmem:[#allocation5 + $0x20] sm:$0xff]
    %v150 = vld [vmem:[#allocation5 + $0x28] sm:$0xff]
    %v151 = vld [vmem:[#allocation5 + $0x30] sm:$0xff]
    %v152 = vld [vmem:[#allocation5 + $0x38] sm:$0xff]
    %vm153 = vcmp.ne.f32.partialorder %v147, %v147
    %vm154 = vcmp.ne.f32.partialorder %v148, %v148
    %vm155 = vmxor %vm153, 1
    %vm156 = vmxor %vm154, 1
    %v157 = vsub.f32 %v141, %v147
    %v158 = vsub.f32 %v142, %v148
    %v159 = vmul.f32 %v157, %v157
    %v160 = vmul.f32 %v158, %v158
    %v161 = vsub.f32 %v143, %v149
    %v162 = vsub.f32 %v144, %v150
    %v163 = vmul.f32 %v161, %v161
    %v164 = vmul.f32 %v162, %v162
    %v165 = vadd.f32 %v159, %v163
    %v166 = vadd.f32 %v160, %v164
    %v167 = vrsqrt.pop %v165
    %v168 = vmul.f32 %v167, %v165
    %v169 = vmul.f32 %v168, %v167
    %v170 = vmul.f32 0.5, %v169
    %v171 = vsub.f32 1.5, %v170
    %v172 = vmul.f32 %v167, %v171
    %v173 = vmul.f32 %v165, %v172
    %vm174 = vcmp.eq.f32.partialorder %v165, inf
    %v175 = vsel %vm174, %v165, %v173
    %vm176 = vcmp.eq.f32.partialorder %v165, 0.0
    %v177 = vand.u32 %v165, 2147483648
    %v178 = vsel %vm176, %v177, %v175
    %v179 = vrsqrt.pop %v166
    %v180 = vmul.f32 %v179, %v166
    %v181 = vmul.f32 %v180, %v179
    %v182 = vmul.f32 0.5, %v181
    %v183 = vsub.f32 1.5, %v182
    %v184 = vmul.f32 %v179, %v183
    %v185 = vmul.f32 %v166, %v184
    %vm186 = vcmp.eq.f32.partialorder %v166, inf
    %v187 = vsel %vm186, %v166, %v185
    %vm188 = vcmp.eq.f32.partialorder %v166, 0.0
    %v189 = vand.u32 %v166, 2147483648
    %v190 = vsel %vm188, %v189, %v187
    %v191 = vmul.f32 %v145, 0.33333334
    %v192 = vmul.f32 %v146, 0.33333334
    %v193 = vtanh.pop %v191
    %v194 = vtanh.pop %v192
    %v195 = vmul.f32 %v193, 3.0
    %v196 = vmul.f32 %v194, 3.0
    %v197 = vadd.f32 %v178, %v151
    %v198 = vadd.f32 %v190, %v152
    %v199 = vsub.f32 0.0, %v195
    %v200 = vsub.f32 0.0, %v196
    %v201 = vmul.f32 %v199, 1.442695
    %v202 = vpow.pop %v201
    %v203 = vmul.f32 %v200, 1.442695
    %v204 = vpow.pop %v203
    %v205 = vmul.f32 %v197, %v202
    %v206 = vmul.f32 %v198, %v204
    %v207 = vadd.f32 %v195, %v205
    %v208 = vadd.f32 %v196, %v206
    %vm209 = vmand %vm134, %vm155
    %vm210 = vmand %vm134, %vm156
    %v211 = vsel %vm209, %v207, 0.0
    %v212 = vsel %vm210, %v208, 0.0
    %v213 = vadd.f32 %v211, 0.0
    %v214 = vadd.f32 %v212, 0.0
    %v215 = vld [vmem:[#allocation2 + $0x40] sm:$0xff]
    %v216 = vld [vmem:[#allocation2 + $0x48] sm:$0xff]
    %v217 = vld [vmem:[#allocation5 + $0x40] sm:$0xff]
    %v218 = vld [vmem:[#allocation5 + $0x48] sm:$0xff]
    %vm219 = vcmp.ne.f32.partialorder %v217, %v217
    %vm220 = vcmp.ne.f32.partialorder %v218, %v218
    %vm221 = vmxor %vm219, 1
    %vm222 = vmxor %vm220, 1
    %v223 = vmax.f32 %v215, 0.0
    %v224 = vmax.f32 %v216, 0.0
    %v225 = vand.u32 2147483647, %v215
    %v226 = vand.u32 2147483647, %v216
    %v227 = vsub.f32 0.0, %v225
    %v228 = vsub.f32 0.0, %v226
    %v229 = vmul.f32 %v227, 1.442695
    %v230 = vpow.pop %v229
    %v231 = vmul.f32 %v228, 1.442695
    %v232 = vpow.pop %v231
    %v233 = vadd.f32 %v230, 1.0
    %v234 = vadd.f32 %v232, 1.0
    %v235 = vlog2.pop %v233
    %v236 = vmul.f32 %v235, 0.6931472
    %v237 = vlog2.pop %v234
    %v238 = vmul.f32 %v237, 0.6931472
    %v239 = vadd.f32 %v223, %v236
    %v240 = vadd.f32 %v224, %v238
    %v241 = vsub.f32 %v239, %v217
    %v242 = vsub.f32 %v240, %v218
    %v243 = vand.u32 2147483647, %v241
    %v244 = vand.u32 2147483647, %v242
    %v245 = vadd.f32 %v217, 0.1
    %v246 = vadd.f32 %v218, 0.1
    %v247 = vrcp.pop %v245
    %v248 = vrcp.pop %v246
    %v249 = vmul.f32 %v243, %v247
    %v250 = vmul.f32 %v244, %v248
    %vm251 = vmand %vm134, %vm221
    %vm252 = vmand %vm134, %vm222
    %v253 = vsel %vm251, %v249, 0.0
    %v254 = vsel %vm252, %v250, 0.0
    %v255 = vadd.f32 %v253, 0.0
    %v256 = vadd.f32 %v254, 0.0
    %v257 = vld [vmem:[#allocation7] sm:$0xff]
    %v258 = vld [vmem:[#allocation7 + $0x8] sm:$0xff]
    %v259 = vadd.f32 %v257, %v139
    %v260 = vadd.f32 %v258, %v140
    %261 = vst [vmem:[#allocation7] sm:$0xff] %v259
    %262 = vst [vmem:[#allocation7 + $0x8] sm:$0xff] %v260
    %s263 = scalar_lea.vmem [#allocation7], 16
    %v264 = vld [vmem:[%s263] sm:$0xff]
    %v265 = vld [vmem:[%s263 + $0x8] sm:$0xff]
    %v266 = vadd.f32 %v264, %v213
    %v267 = vadd.f32 %v265, %v214
    %268 = vst [vmem:[%s263] sm:$0xff] %v266
    %269 = vst [vmem:[%s263 + $0x8] sm:$0xff] %v267
    %s270 = scalar_lea.vmem [#allocation7], 32
    %v271 = vld [vmem:[%s270] sm:$0xff]
    %v272 = vld [vmem:[%s270 + $0x8] sm:$0xff]
    %v273 = vadd.f32 %v271, %v255
    %v274 = vadd.f32 %v272, %v256
    %275 = vst [vmem:[%s270] sm:$0xff] %v273
    %276 = vst [vmem:[%s270 + $0x8] sm:$0xff] %v274
    // Predicated region
    $region22: #{tpu_custom_call.1} parent=1 // pred_check
      _
    $region23: #{tpu_custom_call.1} parent=1 // pred_check_branch
      %278 = sbr.rel (0) target = $region25
    $region24: #{tpu_custom_call.1} parent=1 // pred_region
      %280 = vsyncadd [#allocation4], 0
      %s281 = sshll.u32 [#allocation7], 4
      %s282 = int_to_ptr.vmem [resolvable:$true] %s281
      %s283 = sshll.u32 %s2, 4
      %s284 = int_to_ptr.hbm [resolvable:$true] %s283
      %289 = dma.vmem_to_hbm [thread:$0]  %s282, 768, %s284, [#allocation4], 256, 256, 16
    $region25: #{tpu_custom_call.1} parent=1 // pred_fallthru
      _
    // Predicated region
    $region26: #{tpu_custom_call.1} parent=1 // pred_check
      _
    $region27: #{tpu_custom_call.1} parent=1 // pred_check_branch
      %291 = sbr.rel (0) target = $region29
    $region28: #{tpu_custom_call.1} parent=1 // pred_region
      %293 = dma.done [#allocation4], 768
    $region29: #{tpu_custom_call.1} parent=1 // pred_fallthru
      _
    %294 = vsyncpa [#allocation3], 1
    %295 = vsyncpa [#allocation6], 1
    %296 = vsyncpa [#allocation4], 1

</llo_original>
